<compile_context>
chip_gen: v7x
topology: tpu7x:2x2x1
jax: 0.10.0
libtpu: 0.0.40
codegen_flags: <defaults>
</compile_context>

<pallas_src>
import functools

import jax
import jax.numpy as jnp
from jax.experimental import pallas as pl
from jax.experimental.pallas import tpu as pltpu

LN_EPS = 1e-5  # nn.LayerNorm default


def _round_up(x, m):
    return (x + m - 1) // m * m


def _patch_embed_kernel(p_ref, w_ref, params_ref, o_ref, *, e_actual):
    # p_ref:      (TM, Kp)  im2col patches tile (compute dtype, e.g. bf16)
    # w_ref:      (Kp, Ep)  flattened conv weight (compute dtype), resident
    # params_ref: (3,  Ep)  rows = [conv bias, ln gamma, ln beta] (f32), resident
    # o_ref:      (TM, Ep)
    y = jnp.dot(p_ref[...], w_ref[...], preferred_element_type=jnp.float32)

    params = params_ref[...]
    bias = params[0:1, :]
    gamma = params[1:2, :]
    beta = params[2:3, :]

    # Padded E columns of y are exactly 0 (zero weight cols + zero bias), so sums over the
    # padded axis divided by the *real* E give correct LayerNorm statistics, and the
    # E[y^2] - mean^2 form needs no column mask (padded cols contribute 0 to both sums).
    y = y + bias
    inv_e = 1.0 / e_actual
    mean = jnp.sum(y, axis=-1, keepdims=True) * inv_e
    mean_sq = jnp.sum(y * y, axis=-1, keepdims=True) * inv_e
    var = mean_sq - mean * mean
    inv_std = jax.lax.rsqrt(var + LN_EPS)  # EUP slot
    o_ref[...] = ((y - mean) * inv_std * gamma + beta).astype(o_ref.dtype)


def patch_embed_forward(x, conv_w, conv_b, ln_gamma, ln_beta, patch_size,
                        *, tm=512, compute_dtype=jnp.bfloat16, out_dtype=None):
    """x: (B, C, H, W) NCHW (PyTorch convention).

    Returns (out, (Hp, Wp)) with out: (B, N, E), N = Hp*Wp.
    out_dtype defaults to x.dtype (module semantics); pass jnp.bfloat16 to halve the
    output HBM stream when the downstream consumer is bf16.
    """
    B, C, H, W = x.shape
    ph, pw = patch_size
    assert H % ph == 0 and W % pw == 0
    Hp, Wp = H // ph, W // pw
    N = Hp * Wp
    E = conv_w.shape[0]
    K = C * ph * pw
    M = B * N
    out_dtype = x.dtype if out_dtype is None else out_dtype

    # Lane-align K and E to 128 (zero pad; padded output cols sliced off afterwards).
    K_pad = _round_up(K, 128)
    E_pad = _round_up(E, 128)

    # Row tile: ensure >= 2 grid steps (megacore split on v7x + DMA/compute overlap),
    # prefer 128-multiples (full MXU LHS passes) when the row count allows it.
    half_m = _round_up(max(pl.cdiv(M, 2), 1), 8)
    if half_m >= 128:
        half_m = _round_up(half_m, 128)
    tm_eff = min(tm, half_m)
    grid_m = pl.cdiv(M, tm_eff)  # ragged last block: Pallas masks the OOB writeback

    # --- wrapper-side glue (XLA): im2col patch extraction ---
    # Cast first so the permute moves compute_dtype (bf16) bytes, not f32.
    # (B,C,H,W) -> (B,C,Hp,ph,Wp,pw) -> (B,Hp,Wp,C,ph,pw) -> (B*N, K).
    # K ordering (C, ph, pw) matches the flattened Conv2d weight (E, C, ph, pw).
    patches = x.astype(compute_dtype).reshape(B, C, Hp, ph, Wp, pw)
    patches = jnp.transpose(patches, (0, 2, 4, 1, 3, 5)).reshape(M, K)
    if K_pad != K:
        patches = jnp.pad(patches, ((0, 0), (0, K_pad - K)))

    w_mat = conv_w.reshape(E, K).T.astype(compute_dtype)     # (K, E)
    w_mat = jnp.pad(w_mat, ((0, K_pad - K), (0, E_pad - E)))

    params = jnp.stack([conv_b, ln_gamma, ln_beta]).astype(jnp.float32)  # (3, E)
    params = jnp.pad(params, ((0, 0), (0, E_pad - E)))

    kernel = functools.partial(_patch_embed_kernel, e_actual=E)

    # VMEM per step: double-buffered patch/out tiles + single-buffered resident weight &
    # params + ~3 f32 full-tile temporaries (y, y*y, centered) for the LN math.
    cbytes = jnp.dtype(compute_dtype).itemsize
    obytes = jnp.dtype(out_dtype).itemsize
    vmem_est = (2 * tm_eff * K_pad * cbytes        # patches (double-buffered)
                + K_pad * E_pad * cbytes           # weight (Buffered(1))
                + 3 * E_pad * 4                    # params (Buffered(1))
                + 2 * tm_eff * E_pad * obytes      # output (double-buffered)
                + 3 * tm_eff * E_pad * 4)          # f32 intermediates
    # Raise the scoped limit when needed; stay well under v7x's 64 MiB physical VMEM
    # (v5e/v6e have 128 MiB physical).
    vmem_limit = int(min(max(int(vmem_est * 1.3) + (2 << 20), 32 << 20), 56 << 20))

    out = pl.pallas_call(
        kernel,
        out_shape=jax.ShapeDtypeStruct((M, E_pad), out_dtype),
        grid_spec=pltpu.PrefetchScalarGridSpec(
            num_scalar_prefetch=0,
            grid=(grid_m,),
            in_specs=[
                pl.BlockSpec((tm_eff, K_pad), lambda i: (i, 0)),
                # Constant block index -> fetched once; single buffer saves VMEM.
                pl.BlockSpec((K_pad, E_pad), lambda i: (0, 0),
                             pipeline_mode=pl.Buffered(1)),
                pl.BlockSpec((3, E_pad), lambda i: (0, 0),
                             pipeline_mode=pl.Buffered(1)),
            ],
            out_specs=pl.BlockSpec((tm_eff, E_pad), lambda i: (i, 0)),
        ),
        compiler_params=pltpu.CompilerParams(
            dimension_semantics=("parallel",),
            vmem_limit_bytes=vmem_limit,
            # Let XLA fuse the cast/pad/transpose producing `patches` into the operand.
            allow_input_fusion=[True, False, False],
        ),
    )(patches, w_mat, params)

    if E_pad != E:
        out = out[:, :E]
    out = out.reshape(B, N, E)
    return out, (Hp, Wp)


def reference_forward(x, conv_w, conv_b, ln_gamma, ln_beta, patch_size):
    """Pure-JAX f32 reference matching the PyTorch forward."""
    ph, pw = patch_size
    y = jax.lax.conv_general_dilated(
        x, conv_w, window_strides=(ph, pw), padding="VALID",
        dimension_numbers=("NCHW", "OIHW", "NCHW"))
    y = y + conv_b[None, :, None, None]
    B, E, Hp, Wp = y.shape
    y = y.reshape(B, E, Hp * Wp).transpose(0, 2, 1)  # (B, N, E)
    mean = jnp.mean(y, axis=-1, keepdims=True)
    var = jnp.mean(jnp.square(y - mean), axis=-1, keepdims=True)
    y = (y - mean) * jax.lax.rsqrt(var + LN_EPS)
    return y * ln_gamma + ln_beta, (Hp, Wp)


if __name__ == "__main__":
    # Small, module-consistent shapes: img_size=16, patch_size=4, in_chans=4, embed_dim=32
    B, C, H, W = 2, 4, 16, 16
    ph = pw = 4
    E = 32

    key = jax.random.PRNGKey(0)
    k_x, k_w, k_b, k_g, k_beta = jax.random.split(key, 5)

    x = jax.random.normal(k_x, (B, C, H, W), dtype=jnp.float32)
    conv_w = jax.random.normal(k_w, (E, C, ph, pw), dtype=jnp.float32) * 0.05
    conv_b = jax.random.normal(k_b, (E,), dtype=jnp.float32) * 0.01
    ln_gamma = 1.0 + 0.1 * jax.random.normal(k_g, (E,), dtype=jnp.float32)
    ln_beta = 0.1 * jax.random.normal(k_beta, (E,), dtype=jnp.float32)

    ref_out, (rHp, rWp) = reference_forward(
        x, conv_w, conv_b, ln_gamma, ln_beta, (ph, pw))

    # Default fast path: bf16 MXU operands, f32 accumulation + f32 LayerNorm math.
    fwd = functools.partial(patch_embed_forward, patch_size=(ph, pw))
    out, (Hp, Wp) = fwd(x, conv_w, conv_b, ln_gamma, ln_beta)
    out = jax.block_until_ready(out)

    assert out.shape == (B, Hp * Wp, E)
    assert (Hp, Wp) == (rHp, rWp) == (H // ph, W // pw)
    # Tolerance reflects bf16 operand quantization on the MXU (accumulation is f32).
    assert jnp.allclose(out, ref_out, atol=3e-2, rtol=3e-2), "bf16 path mismatch vs reference"

    # Exact-semantics check: f32 operands must match the reference tightly.
    out32, _ = fwd(x, conv_w, conv_b, ln_gamma, ln_beta, compute_dtype=jnp.float32)
    out32 = jax.block_until_ready(out32)
    assert jnp.allclose(out32, ref_out, atol=1e-4, rtol=1e-4), "f32 path mismatch vs reference"

    print("KERNEL_OK")
</pallas_src>

<mosaic_0001>
module attributes {stable_mosaic.version = 11 : i64} {
  func.func @_patch_embed_kernel(%arg0: i32, %arg1: memref<16x128xbf16, #tpu.memory_space<vmem>>, %arg2: memref<128x128xbf16, #tpu.memory_space<vmem>>, %arg3: memref<3x128xf32, #tpu.memory_space<vmem>>, %arg4: memref<16x128xf32, #tpu.memory_space<vmem>>) attributes {dimension_semantics = [#tpu.dimension_semantics<parallel>], iteration_bounds = array<i64: 2>, scalar_prefetch = 0 : i64, scratch_operands = 0 : i64, tpu.core_type = #tpu.core_type<tc>, window_params = [{transform_indices = @transform_0, window_bounds = array<i64: 16, 128>}, {pipeline_mode = #tpu.pipeline_mode<synchronous>, transform_indices = @transform_1, window_bounds = array<i64: 128, 128>}, {pipeline_mode = #tpu.pipeline_mode<synchronous>, transform_indices = @transform_2, window_bounds = array<i64: 3, 128>}, {transform_indices = @transform_3, window_bounds = array<i64: 16, 128>}]} {
    %c0 = arith.constant 0 : index
    %c0_0 = arith.constant 0 : index
    %0 = vector.load %arg1[%c0, %c0_0] : memref<16x128xbf16, #tpu.memory_space<vmem>>, vector<16x128xbf16>
    %c0_1 = arith.constant 0 : index
    %c0_2 = arith.constant 0 : index
    %1 = vector.load %arg2[%c0_1, %c0_2] : memref<128x128xbf16, #tpu.memory_space<vmem>>, vector<128x128xbf16>
    %cst = arith.constant dense<0.000000e+00> : vector<16x128xf32>
    %2 = tpu.matmul %0, %1, %cst {dimension_numbers = #tpu.dot_dimension_numbers<[1], [0], [0], [1], [0, 0, 1, 1], [], []>} : vector<16x128xbf16>, vector<128x128xbf16>, vector<16x128xf32> -> vector<16x128xf32>
    %c0_3 = arith.constant 0 : index
    %c0_4 = arith.constant 0 : index
    %3 = vector.load %arg3[%c0_3, %c0_4] : memref<3x128xf32, #tpu.memory_space<vmem>>, vector<3x128xf32>
    %4 = vector.extract_strided_slice %3 {offsets = [0, 0], sizes = [1, 128], strides = [1, 1]} : vector<3x128xf32> to vector<1x128xf32>
    %5 = vector.extract_strided_slice %3 {offsets = [1, 0], sizes = [1, 128], strides = [1, 1]} : vector<3x128xf32> to vector<1x128xf32>
    %6 = vector.extract_strided_slice %3 {offsets = [2, 0], sizes = [1, 128], strides = [1, 1]} : vector<3x128xf32> to vector<1x128xf32>
    %7 = vector.broadcast %4 : vector<1x128xf32> to vector<16x128xf32>
    %8 = arith.addf %2, %7 : vector<16x128xf32>
    %cst_5 = arith.constant dense<0.000000e+00> : vector<16xf32>
    %9 = vector.multi_reduction <add>, %8, %cst_5 [1] : vector<16x128xf32> to vector<16xf32>
    %10 = vector.shape_cast %9 : vector<16xf32> to vector<16x1xf32>
    %cst_6 = arith.constant 3.125000e-02 : f32
    %11 = vector.broadcast %cst_6 : f32 to vector<16x1xf32>
    %12 = arith.mulf %10, %11 : vector<16x1xf32>
    %13 = arith.mulf %8, %8 : vector<16x128xf32>
    %cst_7 = arith.constant dense<0.000000e+00> : vector<16xf32>
    %14 = vector.multi_reduction <add>, %13, %cst_7 [1] : vector<16x128xf32> to vector<16xf32>
    %15 = vector.shape_cast %14 : vector<16xf32> to vector<16x1xf32>
    %cst_8 = arith.constant 3.125000e-02 : f32
    %16 = vector.broadcast %cst_8 : f32 to vector<16x1xf32>
    %17 = arith.mulf %15, %16 : vector<16x1xf32>
    %18 = arith.mulf %12, %12 : vector<16x1xf32>
    %19 = arith.subf %17, %18 : vector<16x1xf32>
    %cst_9 = arith.constant 9.99999974E-6 : f32
    %20 = vector.broadcast %cst_9 : f32 to vector<16x1xf32>
    %21 = arith.addf %19, %20 : vector<16x1xf32>
    %22 = math.rsqrt %21 : vector<16x1xf32>
    %23 = vector.broadcast %12 : vector<16x1xf32> to vector<16x128xf32>
    %24 = arith.subf %8, %23 : vector<16x128xf32>
    %25 = vector.broadcast %22 : vector<16x1xf32> to vector<16x128xf32>
    %26 = arith.mulf %24, %25 : vector<16x128xf32>
    %27 = vector.broadcast %5 : vector<1x128xf32> to vector<16x128xf32>
    %28 = arith.mulf %26, %27 : vector<16x128xf32>
    %29 = vector.broadcast %6 : vector<1x128xf32> to vector<16x128xf32>
    %30 = arith.addf %28, %29 : vector<16x128xf32>
    %c0_10 = arith.constant 0 : index
    %c0_11 = arith.constant 0 : index
    %31 = vector.load %arg4[%c0_10, %c0_11] : memref<16x128xf32, #tpu.memory_space<vmem>>, vector<16x128xf32>
    tpu.vector_store %arg4[%c0_10, %c0_11], %30 {strides = array<i32>} : memref<16x128xf32, #tpu.memory_space<vmem>>, vector<16x128xf32>,
    return
  }
  func.func @transform_0(%arg0: i32) -> (i32, i32) {
    %c0_i32 = arith.constant 0 : i32
    %c0_i32_0 = arith.constant 0 : i32
    return %arg0, %c0_i32 : i32, i32
  }
  func.func @transform_1(%arg0: i32) -> (i32, i32) {
    %c0_i32 = arith.constant 0 : i32
    %c0_i32_0 = arith.constant 0 : i32
    %c0_i32_1 = arith.constant 0 : i32
    return %c0_i32, %c0_i32_0 : i32, i32
  }
  func.func @transform_2(%arg0: i32) -> (i32, i32) {
    %c0_i32 = arith.constant 0 : i32
    %c0_i32_0 = arith.constant 0 : i32
    %c0_i32_1 = arith.constant 0 : i32
    return %c0_i32, %c0_i32_0 : i32, i32
  }
  func.func @transform_3(%arg0: i32) -> (i32, i32) {
    %c0_i32 = arith.constant 0 : i32
    %c0_i32_0 = arith.constant 0 : i32
    return %arg0, %c0_i32 : i32, i32
  }
}

</mosaic_0001>

<llo_original>
// kernel: tpu_custom_call.1
$region0: #{tpu_custom_call.1}
  #allocation0 [shape = 'u32[]', space=smem, size = 0x4, offset = 0x4, fixed_abs, tag = 'smem constant byte address 0x4 - core index']
  #allocation1 [shape = 'u32[144,128]{1,0:T(1,128)}', space=vmem, size = 0x12000, scoped, tag = 'internal scratch']
  %s0 = inlined_call_operand.hbm [shape: bf16[32,128], index: 0, kind: input, shape index: {}]
  %s1 = inlined_call_operand.hbm [shape: bf16[128,128], index: 1, kind: input, shape index: {}]
  %s2 = inlined_call_operand.vmem [shape: f32[3,128], index: 2, kind: input, shape index: {}]
  %s3 = inlined_call_operand.hbm [shape: f32[32,128], index: 3, kind: output, shape index: {}]
  %s4 = sld [smem:[#allocation0]]
  $region53: #{tpu_custom_call.1} parent=0
    _
  %s6 = ssub.s32 1, %s4
  %s7 = scalar_select 0, %s6, %s4
  $region1: #{tpu_custom_call.1} parent=0
    #allocation2 [shape = 'u8[8192]{0}', space=vmem, size = 0x2000, scoped, tag = 'input window, operand 0']
    #allocation3 [shape = 's32[2]{0}', space=sflag, size = 0x8, scoped, tag = 'scoped memory for tpu_custom_call.1']
    #allocation4 [shape = 's32[2]{0}', space=sflag, size = 0x8, scoped, tag = 'scoped memory for tpu_custom_call.1']
    #allocation5 [shape = 'u8[32768]{0}', space=vmem, size = 0x8000, scoped, tag = 'input window, operand 1, single buffered']
    #allocation6 [shape = 's32[1]{0}', space=sflag, size = 0x4, scoped, tag = 'scoped memory for tpu_custom_call.1']
    #allocation7 [shape = 'u8[16384]{0}', space=vmem, size = 0x4000, scoped, tag = 'output window, operand 0']
    %8 = vsyncpa [#allocation3], 0
    %s9 = scalar_lea.sflag [#allocation3], 1
    %10 = vsyncpa %s9, 0
    %11 = vsyncpa [#allocation6], 0
    %12 = vsyncpa [#allocation4], 0
    %s13 = scalar_lea.sflag [#allocation4], 1
    %14 = vsyncpa %s13, 0
    loop: start=0, step=1, limit=4
    $region2: #{tpu_custom_call.1} parent=1 // loop_pre_header
      _
    $region3: #{tpu_custom_call.1} parent=1 // loop_header
      %s16 = sphi 0, %s20
      %p17 = scmp.ge.s32.totalorder %s16, 4
      %s26 = sphi 0, %s28
      %s29 = sphi 0, %s26
      %s30 = sphi 0, %s29
      %s46 = sphi 0, %s30
      %s50 = sphi 0, %s50
      %s52 = sphi 0, %s50
      %s53 = sphi 0, %s52
      %s67 = sphi 0, %s53
      %s71 = sphi 0, %s71
      %s73 = sphi 0, %s71
      %s74 = sphi 0, %s73
      %s88 = sphi 0, %s74
      %s94 = sphi 0, %s96
      %s97 = sphi 0, %s94
      %s98 = sphi 0, %s97
      %s114 = sphi 0, %s98
    $region4: #{tpu_custom_call.1} parent=1 // loop_header_branch
      %19 = sbr.rel (%p17) target = $region8
    $region5: #{tpu_custom_call.1} parent=1 // loop_body
      %s21 = ssub.s32 %s16, 1
      %s22 = ssub.s32 %s16, 2
      %s23 = sadd.s32 %s16, 1
      %s24 = ssub.s32 %s16, %s23
      %p25 = scmp.eq.s32.totalorder %s24, 0
      %s27 = sadd.s32 %s26, 1
      %s28 = scalar_select %p25, %s26, %s27
      %p31 = pneg %p25
      %p32 = scmp.eq.s32.totalorder %s16, 1
      %p33 = por %p31, %p32
      %p34 = scmp.ne.s32.totalorder %s26, %s29
      %p35 = scmp.eq.s32.totalorder %s16, 0
      %p36 = por %p34, %p35
      %p37 = scmp.ne.s32.totalorder %s26, %s29
      %p38 = scmp.eq.s32.totalorder %s21, 1
      %p39 = por %p37, %p38
      %p40 = scmp.ne.s32.totalorder %s29, %s30
      %p41 = scmp.eq.s32.totalorder %s21, 0
      %p42 = por %p40, %p41
      %p43 = scmp.ne.s32.totalorder %s29, %s30
      %p44 = scmp.eq.s32.totalorder %s22, 1
      %p45 = por %p43, %p44
      %p47 = scmp.ne.s32.totalorder %s30, %s46
      %p48 = scmp.eq.s32.totalorder %s22, 0
      %p49 = por %p47, %p48
      %s51 = sadd.s32 %s50, 1
      %p54 = scmp.eq.s32.totalorder %s16, 1
      %p55 = scmp.ne.s32.totalorder %s50, %s52
      %p56 = scmp.eq.s32.totalorder %s16, 0
      %p57 = por %p55, %p56
      %p58 = scmp.ne.s32.totalorder %s50, %s52
      %p59 = scmp.eq.s32.totalorder %s21, 1
      %p60 = por %p58, %p59
      %p61 = scmp.ne.s32.totalorder %s52, %s53
      %p62 = scmp.eq.s32.totalorder %s21, 0
      %p63 = por %p61, %p62
      %p64 = scmp.ne.s32.totalorder %s52, %s53
      %p65 = scmp.eq.s32.totalorder %s22, 1
      %p66 = por %p64, %p65
      %p68 = scmp.ne.s32.totalorder %s53, %s67
      %p69 = scmp.eq.s32.totalorder %s22, 0
      %p70 = por %p68, %p69
      %s72 = sadd.s32 %s71, 1
      %p75 = scmp.eq.s32.totalorder %s16, 1
      %p76 = scmp.ne.s32.totalorder %s71, %s73
      %p77 = scmp.eq.s32.totalorder %s16, 0
      %p78 = por %p76, %p77
      %p79 = scmp.ne.s32.totalorder %s71, %s73
      %p80 = scmp.eq.s32.totalorder %s21, 1
      %p81 = por %p79, %p80
      %p82 = scmp.ne.s32.totalorder %s73, %s74
      %p83 = scmp.eq.s32.totalorder %s21, 0
      %p84 = por %p82, %p83
      %p85 = scmp.ne.s32.totalorder %s73, %s74
      %p86 = scmp.eq.s32.totalorder %s22, 1
      %p87 = por %p85, %p86
      %p89 = scmp.ne.s32.totalorder %s74, %s88
      %p90 = scmp.eq.s32.totalorder %s22, 0
      %p91 = por %p89, %p90
      %s92 = ssub.s32 %s16, %s23
      %p93 = scmp.eq.s32.totalorder %s92, 0
      %s95 = sadd.s32 %s94, 1
      %s96 = scalar_select %p93, %s94, %s95
      %p99 = pneg %p93
      %p100 = scmp.eq.s32.totalorder %s16, 1
      %p101 = por %p99, %p100
      %p102 = scmp.ne.s32.totalorder %s94, %s97
      %p103 = scmp.eq.s32.totalorder %s16, 0
      %p104 = por %p102, %p103
      %p105 = scmp.ne.s32.totalorder %s94, %s97
      %p106 = scmp.eq.s32.totalorder %s21, 1
      %p107 = por %p105, %p106
      %p108 = scmp.ne.s32.totalorder %s97, %s98
      %p109 = scmp.eq.s32.totalorder %s21, 0
      %p110 = por %p108, %p109
      %p111 = scmp.ne.s32.totalorder %s97, %s98
      %p112 = scmp.eq.s32.totalorder %s22, 1
      %p113 = por %p111, %p112
      %p115 = scmp.ne.s32.totalorder %s98, %s114
      %p116 = scmp.eq.s32.totalorder %s22, 0
      %p117 = por %p115, %p116
      %p118 = scmp.le.s32.totalorder 1, %s16
      %p119 = scmp.lt.s32.totalorder %s16, 3
      %p120 = pnand %p118, %p119
      %p121 = pneg %p120
      // Predicated region
      $region9: #{tpu_custom_call.1} parent=5 // pred_check
        _
      $region10: #{tpu_custom_call.1} parent=5 // pred_check_branch
        %123 = sbr.rel (%p120) target = $region12
      $region11: #{tpu_custom_call.1} parent=5 // pred_region
        %s124 = ssub.s32 %s16, 1
        // Predicated region
        $region13: #{tpu_custom_call.1} parent=11 // pred_check
          %p125 = pneg %p63
        $region14: #{tpu_custom_call.1} parent=11 // pred_check_branch
          %127 = sbr.rel (%p125) target = $region16
        $region15: #{tpu_custom_call.1} parent=11 // pred_region
          %s129 = ssub.s32 1024, 1024
          %130 = vsyncadd [#allocation6], %s129
          %s131 = sshll.u32 [#allocation5], 4
          %s132 = int_to_ptr.vmem [resolvable:$true] %s131
          %137 = dma.hbm_to_vmem [thread:$0]  %s1, 1024, %s132, [#allocation6], 64, 64, 4
        $region16: #{tpu_custom_call.1} parent=11 // pred_fallthru
          _
        // Predicated region
        $region17: #{tpu_custom_call.1} parent=11 // pred_check
          %p138 = pneg %p84
        $region18: #{tpu_custom_call.1} parent=11 // pred_check_branch
          %140 = sbr.rel (%p138) target = $region20
        $region19: #{tpu_custom_call.1} parent=11 // pred_region
          _
        $region20: #{tpu_custom_call.1} parent=11 // pred_fallthru
          _
      $region12: #{tpu_custom_call.1} parent=5 // pred_fallthru
        _
      %p141 = scmp.lt.s32.totalorder %s16, 2
      // Predicated region
      $region21: #{tpu_custom_call.1} parent=5 // pred_check
        %p142 = pneg %p141
      $region22: #{tpu_custom_call.1} parent=5 // pred_check_branch
        %144 = sbr.rel (%p142) target = $region24
      $region23: #{tpu_custom_call.1} parent=5 // pred_region
        // Predicated region
        $region25: #{tpu_custom_call.1} parent=23 // pred_check
          %p145 = pneg %p36
        $region26: #{tpu_custom_call.1} parent=23 // pred_check_branch
          %147 = sbr.rel (%p145) target = $region28
        $region27: #{tpu_custom_call.1} parent=23 // pred_region
          %s148 = sand.u32 %s26, 1
          %s149 = scalar_lea.sflag [#allocation3], %s148
          %s150 = sand.u32 %s26, 1
          %s151 = smul.addr %s150, 8
          %s152 = scalar_lea.vmem [#allocation2], %s151
          %s153 = smul.u32 2, %s16
          %s155 = ssub.s32 128, 128
          %156 = vsyncadd %s149, %s155
          %s157 = smul.addr %s153, 64
          %s158 = scalar_lea.hbm %s0, %s157
          %s159 = sshll.u32 %s152, 4
          %s160 = int_to_ptr.vmem [resolvable:$true] %s159
          %165 = dma.hbm_to_vmem [thread:$0]  %s158, 128, %s160, %s149, 64, 64, 4
        $region28: #{tpu_custom_call.1} parent=23 // pred_fallthru
          _
      $region24: #{tpu_custom_call.1} parent=5 // pred_fallthru
        _
      %p166 = scmp.le.s32.totalorder 1, %s16
      %p167 = scmp.lt.s32.totalorder %s16, 3
      %p168 = pnand %p166, %p167
      %p169 = pneg %p168
      // Predicated region
      $region29: #{tpu_custom_call.1} parent=5 // pred_check
        _
      $region30: #{tpu_custom_call.1} parent=5 // pred_check_branch
        %171 = sbr.rel (%p168) target = $region32
      $region31: #{tpu_custom_call.1} parent=5 // pred_region
        %s172 = ssub.s32 %s16, 1
        %s173 = sand.u32 %s29, 1
        %s174 = scalar_lea.sflag [#allocation3], %s173
        %s175 = sand.u32 %s29, 1
        %s176 = smul.addr %s175, 8
        %s177 = scalar_lea.vmem [#allocation2], %s176
        // Predicated region
        $region33: #{tpu_custom_call.1} parent=31 // pred_check
          %p178 = pneg %p42
        $region34: #{tpu_custom_call.1} parent=31 // pred_check_branch
          %180 = sbr.rel (%p178) target = $region36
        $region35: #{tpu_custom_call.1} parent=31 // pred_region
          %181 = dma.done %s174, 128
        $region36: #{tpu_custom_call.1} parent=31 // pred_fallthru
          _
        // Predicated region
        $region37: #{tpu_custom_call.1} parent=31 // pred_check
          %p182 = pneg %p63
        $region38: #{tpu_custom_call.1} parent=31 // pred_check_branch
          %184 = sbr.rel (%p182) target = $region40
        $region39: #{tpu_custom_call.1} parent=31 // pred_region
          %185 = dma.done [#allocation6], 1024
        $region40: #{tpu_custom_call.1} parent=31 // pred_fallthru
          _
        %s186 = sand.u32 %s29, 1
        %s187 = scalar_lea.sflag [#allocation3], %s186
        %s188 = sand.u32 %s29, 1
        %s189 = smul.addr %s188, 8
        %s190 = scalar_lea.vmem [#allocation2], %s189
        %p191 = pneg %p42
        %p192 = pneg %p39
        %p193 = pneg %p63
        %p194 = pneg %p60
        %p195 = pneg %p84
        %p196 = pneg %p81
        %p197 = pneg %p110
        %p198 = pneg %p107
        %s199 = sand.u32 %s97, 1
        %s200 = scalar_lea.sflag [#allocation4], %s199
        %s201 = sand.u32 %s97, 1
        %s202 = smul.addr %s201, 16
        %s203 = scalar_lea.vmem [#allocation7], %s202
        %s204 = smul.u32 2, %s21
        %s205 = smul.u32 2, %s21
        %v207 = vld [vmem:[%s177] sm:$0xf]
        %v208 = vld [vmem:[%s177 + $0x4] sm:$0xf]
        %v209 = vld [vmem:[#allocation5] sm:$0xf]
        %v210 = vld [vmem:[#allocation5 + $0x4] sm:$0xf]
        %v211 = vld [vmem:[#allocation5 + $0x8] sm:$0xf]
        %v212 = vld [vmem:[#allocation5 + $0xc] sm:$0xf]
        %v213 = vld [vmem:[#allocation5 + $0x10] sm:$0xf]
        %v214 = vld [vmem:[#allocation5 + $0x14] sm:$0xf]
        %v215 = vld [vmem:[#allocation5 + $0x18] sm:$0xf]
        %v216 = vld [vmem:[#allocation5 + $0x1c] sm:$0xf]
        %v217 = vld [vmem:[#allocation5 + $0x20] sm:$0xf]
        %v218 = vld [vmem:[#allocation5 + $0x24] sm:$0xf]
        %v219 = vld [vmem:[#allocation5 + $0x28] sm:$0xf]
        %v220 = vld [vmem:[#allocation5 + $0x2c] sm:$0xf]
        %v221 = vld [vmem:[#allocation5 + $0x30] sm:$0xf]
        %v222 = vld [vmem:[#allocation5 + $0x34] sm:$0xf]
        %v223 = vld [vmem:[#allocation5 + $0x38] sm:$0xf]
        %v224 = vld [vmem:[#allocation5 + $0x3c] sm:$0xf]
        %v225 = vld [vmem:[%s2] sm:$0x7]
        %v226 = vlaneseq
        %v227 = vshrl.u32 %v226, 7
        %v228 = vsub.s32 0, %v227
        %v229 = vrot.slane %v225, %v228
        %v232 = vunpack.c.l.b16 %v207
        %v233 = vunpack.c.l.b16 %v208
        %v234 = vpack.c.b16 %v233, %v232
        %v252 = vunpack.c.l.b16 %v209
        %v253 = vunpack.c.l.b16 %v210
        %v254 = vunpack.c.l.b16 %v211
        %v255 = vunpack.c.l.b16 %v212
        %v256 = vunpack.c.l.b16 %v213
        %v257 = vunpack.c.l.b16 %v214
        %v258 = vunpack.c.l.b16 %v215
        %v259 = vunpack.c.l.b16 %v216
        %v260 = vunpack.c.l.b16 %v217
        %v261 = vunpack.c.l.b16 %v218
        %v262 = vunpack.c.l.b16 %v219
        %v263 = vunpack.c.l.b16 %v220
        %v264 = vunpack.c.l.b16 %v221
        %v265 = vunpack.c.l.b16 %v222
        %v266 = vunpack.c.l.b16 %v223
        %v267 = vunpack.c.l.b16 %v224
        %v268 = vpack.c.b16 %v253, %v252
        %v269 = vpack.c.b16 %v255, %v254
        %v270 = vpack.c.b16 %v257, %v256
        %v271 = vpack.c.b16 %v259, %v258
        %v272 = vpack.c.b16 %v261, %v260
        %v273 = vpack.c.b16 %v263, %v262
        %v274 = vpack.c.b16 %v265, %v264
        %v275 = vpack.c.b16 %v267, %v266
        %284 = vmatprep.subr.bf16.mxu0 0
        %285 = vmatpush1.bf16.msra.mxu0 %v268
        %286 = vmatprep.subr.bf16.mxu0 0
        %287 = vmatpush1.bf16.msra.mxu0 %v269
        %288 = vmatprep.subr.bf16.mxu0 0
        %289 = vmatpush1.bf16.msra.mxu0 %v270
        %290 = vmatprep.subr.bf16.mxu0 0
        %291 = vmatpush1.bf16.msra.mxu0 %v271
        %292 = vmatprep.subr.bf16.mxu0 0
        %293 = vmatpush1.bf16.msra.mxu0 %v272
        %294 = vmatprep.subr.bf16.mxu0 0
        %295 = vmatpush1.bf16.msra.mxu0 %v273
        %296 = vmatprep.subr.bf16.mxu0 0
        %297 = vmatpush1.bf16.msra.mxu0 %v274
        %298 = vmatprep.subr.bf16.mxu0 0
        %299 = vmatpush1.bf16.msra.mxu0 %v275
        %300 = vmatprep.subr.bf16.mxu0 0
        %301 = vmatpush1.bf16.msra.mxu0 0
        %302 = vmatprep.subr.bf16.mxu0 0
        %303 = vmatpush1.bf16.msra.mxu0 0
        %304 = vmatprep.subr.bf16.mxu0 0
        %305 = vmatpush1.bf16.msra.mxu0 0
        %306 = vmatprep.subr.bf16.mxu0 0
        %307 = vmatpush1.bf16.msra.mxu0 0
        %308 = vmatprep.subr.bf16.mxu0 0
        %309 = vmatpush1.bf16.msra.mxu0 0
        %310 = vmatprep.subr.bf16.mxu0 0
        %311 = vmatpush1.bf16.msra.mxu0 0
        %312 = vmatprep.subr.bf16.mxu0 0
        %313 = vmatpush1.bf16.msra.mxu0 0
        %314 = vmatprep.subr.bf16.mxu0 0
        %315 = vmatpush1.bf16.msra.mxu0 0
        %316 = vmatprep.mubr.bf16.mxu0 0
        %317 = vmatmul.mubr.bf16.gmra.mrb[0].mxu0 %v234
        %v318 = vpop.f32.mrb[0].mxu0
        %v319 = vadd.f32 %v229, %v318
        %v320 = vpop.f32.mrb[0].mxu0
        %v321 = vpop.f32.mrb[0].mxu0
        %v322 = vadd.f32 %v229, %v321
        %v323 = vpop.f32.mrb[0].mxu0
        %324 = vdwg.mxu0
        %325 = vadd.xlane.f32.xlu0 %v319
        %v326 = vpop.xlane.xlu0 %325
        %327 = vadd.xlane.f32.xlu0 %v322
        %v328 = vpop.xlane.xlu0 %327
        %v329 = vmul.f32 %v326, 0.03125
        %v330 = vmul.f32 %v328, 0.03125
        %v331 = vmul.f32 %v319, %v319
        %v332 = vmul.f32 %v322, %v322
        %333 = vadd.xlane.f32.xlu0 %v331
        %v334 = vpop.xlane.xlu0 %333
        %335 = vadd.xlane.f32.xlu0 %v332
        %v336 = vpop.xlane.xlu0 %335
        %v337 = vmul.f32 %v334, 0.03125
        %v338 = vmul.f32 %v336, 0.03125
        %v339 = vmul.f32 %v329, %v329
        %v340 = vmul.f32 %v330, %v330
        %v341 = vsub.f32 %v337, %v339
        %v342 = vsub.f32 %v338, %v340
        %v343 = vadd.f32 %v341, 1e-05
        %v344 = vadd.f32 %v342, 1e-05
        %v345 = vrsqrt.pop %v343
        %v346 = vrsqrt.pop %v344
        %v347 = vsub.f32 %v319, %v329
        %v348 = vsub.f32 %v322, %v330
        %v349 = vmul.f32 %v347, %v345
        %v350 = vmul.f32 %v348, %v346
        %v351 = vlaneseq
        %v352 = vshrl.u32 %v351, 7
        %v353 = vsub.s32 1, %v352
        %v354 = vrot.slane %v225, %v353
        %v355 = vmul.f32 %v349, %v354
        %v356 = vmul.f32 %v350, %v354
        %v357 = vlaneseq
        %v358 = vshrl.u32 %v357, 7
        %v359 = vsub.s32 2, %v358
        %v360 = vrot.slane %v225, %v359
        %v361 = vadd.f32 %v355, %v360
        %v362 = vadd.f32 %v356, %v360
        %363 = vst [vmem:[%s203] sm:$0xff] %v361
        %364 = vst [vmem:[%s203 + $0x8] sm:$0xff] %v362
        %s365 = sand.u32 %s97, 1
        %s366 = scalar_lea.sflag [#allocation4], %s365
        %s367 = sand.u32 %s97, 1
        %s368 = smul.addr %s367, 16
        %s369 = scalar_lea.vmem [#allocation7], %s368
        // Predicated region
        $region41: #{tpu_custom_call.1} parent=31 // pred_check
          %p370 = pneg %p107
        $region42: #{tpu_custom_call.1} parent=31 // pred_check_branch
          %372 = sbr.rel (%p370) target = $region44
        $region43: #{tpu_custom_call.1} parent=31 // pred_region
          %s373 = smul.u32 2, %s21
          %s375 = ssub.s32 256, 256
          %376 = vsyncadd %s366, %s375
          %s377 = smul.addr %s373, 128
          %s378 = scalar_lea.hbm %s3, %s377
          %s379 = sshll.u32 %s369, 4
          %s380 = int_to_ptr.vmem [resolvable:$true] %s379
          %385 = dma.vmem_to_hbm [thread:$0]  %s380, 256, %s378, %s366, 128, 128, 8
        $region44: #{tpu_custom_call.1} parent=31 // pred_fallthru
          _
      $region32: #{tpu_custom_call.1} parent=5 // pred_fallthru
        _
      %p386 = scmp.le.s32.totalorder 2, %s16
      // Predicated region
      $region45: #{tpu_custom_call.1} parent=5 // pred_check
        %p387 = pneg %p386
      $region46: #{tpu_custom_call.1} parent=5 // pred_check_branch
        %389 = sbr.rel (%p387) target = $region48
      $region47: #{tpu_custom_call.1} parent=5 // pred_region
        %s390 = ssub.s32 %s16, 2
        // Predicated region
        $region49: #{tpu_custom_call.1} parent=47 // pred_check
          %p391 = pneg %p113
        $region50: #{tpu_custom_call.1} parent=47 // pred_check_branch
          %393 = sbr.rel (%p391) target = $region52
        $region51: #{tpu_custom_call.1} parent=47 // pred_region
          %s394 = sand.u32 %s98, 1
          %s395 = scalar_lea.sflag [#allocation4], %s394
          %s396 = sand.u32 %s98, 1
          %s397 = smul.addr %s396, 16
          %s398 = scalar_lea.vmem [#allocation7], %s397
          %399 = dma.done %s395, 256
        $region52: #{tpu_custom_call.1} parent=47 // pred_fallthru
          _
      $region48: #{tpu_custom_call.1} parent=5 // pred_fallthru
        _
    $region6: #{tpu_custom_call.1} parent=1 // loop_footer
      %s20 = sadd.s32 1, %s16
    $region7: #{tpu_custom_call.1} parent=1 // loop_footer_branch
      %15 = sbr.rel target = $region3
    $region8: #{tpu_custom_call.1} parent=1 // loop_exit
      _
    %400 = vsyncpa [#allocation3], 1
    %s401 = scalar_lea.sflag [#allocation3], 1
    %402 = vsyncpa %s401, 1
    %403 = vsyncpa [#allocation6], 1
    %404 = vsyncpa [#allocation4], 1
    %s405 = scalar_lea.sflag [#allocation4], 1
    %406 = vsyncpa %s405, 1

</llo_original>
